<compile_context>
chip_gen: v6e
topology: v6e:2x2x1
jax: 0.10.0
libtpu: 0.0.40
codegen_flags: <defaults>
</compile_context>

<pallas_src>
import jax
import jax.numpy as jnp
from jax.experimental import pallas as pl
from jax.experimental.pallas import tpu as pltpu

# ----- static configuration -------------------------------------------------
B = 2          # batch
C_IN = 16      # in_channels
C_INNER = 32   # inner_channels
L = 64         # sequence length (power of 2 so "pos = lane & (L-1)" is exact)
K = 3          # depthwise kernel size
DIL = 2        # dilation
STRIDE = 1     # stride (must be 1 so residual add shapes match)
EPS = 1e-5
BL = B * L     # fused batch*length axis -> 128 lanes

# SAME padding per get_conv1d_padding_dim (non-causal, stride=1):
#   ceil(dilation*(kernel_size-1)/2)
PAD = -(-(DIL * (K - 1)) // 2)   # = 2  (so taps sit at offsets -DIL, 0, +DIL)


# ----- Pallas kernel ---------------------------------------------------------
def conv1d_block_kernel(x_ref, w_ref, pc_ref, a_ref, o_ref):
    # x_ref : [B, C_IN, L]                  (PyTorch NCL layout, VMEM)
    # w_ref : [C_INNER + C_IN, C_INNER]     rows 0..31 = w1 (cols 0..15 valid),
    #                                       rows 32..47 = w2
    # pc_ref: [C_INNER, 10]                 per-channel params (see wrapper)
    # a_ref : (2,) SMEM                     PReLU slopes (a1, a2)
    # o_ref : [B, C_IN, L]
    inv_n = 1.0 / float(BL)

    # --- rearrange NCL -> lane-dense [C_IN, B*L] inside VMEM -----------------
    x2d = jnp.concatenate([x_ref[b] for b in range(B)], axis=1)   # [16, 128]

    # --- unpack packed parameters --------------------------------------------
    wall = w_ref[...]                          # [48, 32]
    w1 = wall[:C_INNER, :C_IN]                 # [32, 16]
    w2 = wall[C_INNER:, :]                     # [16, 32]

    pcv = pc_ref[...]                          # [32, 10]
    b1_c = pcv[:, 0:1]; g1_c = pcv[:, 1:2]; be1_c = pcv[:, 2:3]
    wd0 = pcv[:, 3:4]; wd1 = pcv[:, 4:5]; wd2 = pcv[:, 5:6]
    bd_c = pcv[:, 6:7]; g2_c = pcv[:, 7:8]; be2_c = pcv[:, 8:9]
    b2_c = pcv[:C_IN, 9:10]                    # [16, 1]

    a1 = a_ref[0]                              # scalar PReLU slopes from SMEM
    a2 = a_ref[1]

    # --- conv1: 1x1 conv == matmul over channels, + bias, + PReLU -----------
    y = jax.lax.dot_general(w1, x2d, (((1,), (0,)), ((), ())),
                            preferred_element_type=jnp.float32)   # [32, 128]
    y = y + b1_c
    y = jnp.where(y >= 0.0, y, a1 * y)

    # --- norm1: BatchNorm1d (training mode), single-pass stats over B*L -----
    s1 = jnp.sum(y, axis=1, keepdims=True)          # [32, 1]
    ss1 = jnp.sum(y * y, axis=1, keepdims=True)     # [32, 1]
    mu1 = s1 * inv_n
    var1 = ss1 * inv_n - mu1 * mu1                  # biased variance
    sc1 = g1_c * jax.lax.rsqrt(var1 + EPS)
    n1 = y * sc1 + (be1_c - mu1 * sc1)              # fused scale+shift

    # --- dconv: depthwise conv (K=3, dilation=2, SAME, stride=1) ------------
    # Lanes encode (b*L + l); shifts along lanes stand in for shifts along L.
    # Edge masks zero both the zero-padding region and any cross-batch wrap.
    pos = jax.lax.broadcasted_iota(jnp.int32, (C_INNER, BL), 1) & (L - 1)
    ym = jnp.where(pos >= DIL, jnp.roll(n1, DIL, axis=1), 0.0)      # n1[l-DIL]
    yp = jnp.where(pos < L - DIL, jnp.roll(n1, -DIL, axis=1), 0.0)  # n1[l+DIL]
    d = wd0 * ym + wd1 * n1 + wd2 * yp + bd_c
    d = jnp.where(d >= 0.0, d, a2 * d)              # PReLU

    # --- norm2: BatchNorm1d ---------------------------------------------------
    s2 = jnp.sum(d, axis=1, keepdims=True)
    ss2 = jnp.sum(d * d, axis=1, keepdims=True)
    mu2 = s2 * inv_n
    var2 = ss2 * inv_n - mu2 * mu2
    sc2 = g2_c * jax.lax.rsqrt(var2 + EPS)
    n2 = d * sc2 + (be2_c - mu2 * sc2)

    # --- conv2: 1x1 back to C_IN, + bias + residual --------------------------
    out = jax.lax.dot_general(w2, n2, (((1,), (0,)), ((), ())),
                              preferred_element_type=jnp.float32)  # [16, 128]
    out = out + b2_c + x2d

    # --- split lane-dense result back into NCL and store ---------------------
    for b in range(B):
        o_ref[b] = out[:, b * L:(b + 1) * L]


# ----- wrapper ---------------------------------------------------------------
def pack_params(params):
    """Pack the 12 PyTorch-style parameters into 3 kernel operands (done once,
    outside the jitted hot path)."""
    (w1, b1, a1, g1, be1, wd, bd, a2, g2, be2, w2, b2) = params
    wcomb = jnp.zeros((C_INNER + C_IN, C_INNER), jnp.float32)
    wcomb = wcomb.at[:C_INNER, :C_IN].set(w1)          # rows 0..31: w1 [32,16]
    wcomb = wcomb.at[C_INNER:, :].set(w2)              # rows 32..47: w2 [16,32]
    b2p = jnp.zeros((C_INNER,), jnp.float32).at[:C_IN].set(b2)
    # per-channel params, one column each:
    #   0:b1 1:g1 2:be1 3:wd[0] 4:wd[1] 5:wd[2] 6:bd 7:g2 8:be2 9:b2(padded)
    pc = jnp.stack([b1, g1, be1, wd[0], wd[1], wd[2], bd, g2, be2, b2p], axis=1)
    slopes = jnp.stack([a1, a2]).astype(jnp.float32)   # (2,) -> SMEM
    return wcomb, pc, slopes


@jax.jit
def conv1d_block(x_ncl, wcomb, pc, slopes):
    """x_ncl: [B, C_IN, L] float32 (PyTorch NCL layout). Returns [B, C_IN, L]."""
    vmem = pl.BlockSpec(memory_space=pltpu.MemorySpace.VMEM)
    smem = pl.BlockSpec(memory_space=pltpu.MemorySpace.SMEM)
    return pl.pallas_call(
        conv1d_block_kernel,
        out_shape=jax.ShapeDtypeStruct((B, C_IN, L), jnp.float32),
        in_specs=[vmem, vmem, vmem, smem],
        out_specs=vmem,
    )(x_ncl, wcomb, pc, slopes)


# ----- pure-JAX reference (NCL layout, mirrors the PyTorch module) ----------
def reference(x_ncl, params):
    (w1, b1, a1, g1, be1, wd, bd, a2, g2, be2, w2, b2) = params
    hp = jax.lax.Precision.HIGHEST

    y = jnp.einsum('bcl,oc->bol', x_ncl, w1, precision=hp) + b1[None, :, None]
    y = jnp.where(y >= 0, y, a1 * y)
    mu = y.mean(axis=(0, 2), keepdims=True)
    var = ((y - mu) ** 2).mean(axis=(0, 2), keepdims=True)
    y = (y - mu) / jnp.sqrt(var + EPS) * g1[None, :, None] + be1[None, :, None]

    wd_oih = wd.T.reshape(C_INNER, 1, K)                       # [C_INNER,1,K]
    d = jax.lax.conv_general_dilated(
        y, wd_oih, window_strides=(STRIDE,), padding=[(PAD, PAD)],
        rhs_dilation=(DIL,), dimension_numbers=('NCH', 'OIH', 'NCH'),
        feature_group_count=C_INNER, precision=hp)
    d = d + bd[None, :, None]
    d = jnp.where(d >= 0, d, a2 * d)
    mu2 = d.mean(axis=(0, 2), keepdims=True)
    var2 = ((d - mu2) ** 2).mean(axis=(0, 2), keepdims=True)
    d = (d - mu2) / jnp.sqrt(var2 + EPS) * g2[None, :, None] + be2[None, :, None]

    out = jnp.einsum('bcl,oc->bol', d, w2, precision=hp) + b2[None, :, None]
    return out + x_ncl


# ----- main ------------------------------------------------------------------
if __name__ == "__main__":
    key = jax.random.PRNGKey(0)
    ks = jax.random.split(key, 12)

    x = jax.random.normal(ks[0], (B, C_IN, L), jnp.float32)

    # deterministic parameter init (shapes follow nn.Conv1d / PReLU / BN)
    w1 = jax.random.normal(ks[1], (C_INNER, C_IN), jnp.float32) * 0.2   # conv1 weight [O,I,1]->[O,I]
    b1 = jax.random.normal(ks[2], (C_INNER,), jnp.float32) * 0.1
    a1 = jnp.float32(0.25)                                              # PReLU default slope
    g1 = 1.0 + 0.1 * jax.random.normal(ks[3], (C_INNER,), jnp.float32)  # BN gamma
    be1 = 0.1 * jax.random.normal(ks[4], (C_INNER,), jnp.float32)       # BN beta
    wd = jax.random.normal(ks[5], (K, C_INNER), jnp.float32) * 0.3      # depthwise [O,1,K] stored as [K,O]
    bd = jax.random.normal(ks[6], (C_INNER,), jnp.float32) * 0.1
    a2 = jnp.float32(0.25)
    g2 = 1.0 + 0.1 * jax.random.normal(ks[7], (C_INNER,), jnp.float32)
    be2 = 0.1 * jax.random.normal(ks[8], (C_INNER,), jnp.float32)
    w2 = jax.random.normal(ks[9], (C_IN, C_INNER), jnp.float32) * 0.2   # conv2 weight [O,I,1]->[O,I]
    b2 = jax.random.normal(ks[10], (C_IN,), jnp.float32) * 0.1

    params = (w1, b1, a1, g1, be1, wd, bd, a2, g2, be2, w2, b2)

    wcomb, pc, slopes = pack_params(params)
    out = conv1d_block(x, wcomb, pc, slopes)
    out = jax.block_until_ready(out)

    ref = jax.block_until_ready(reference(x, params))
    assert out.shape == (B, C_IN, L)
    err = jnp.max(jnp.abs(out - ref))
    assert jnp.allclose(out, ref, rtol=1e-3, atol=1e-3), f"max abs err {err}"

    print("KERNEL_OK")
</pallas_src>

<mosaic_0001>
module attributes {stable_mosaic.version = 11 : i64} {
  func.func @conv1d_block_kernel(%arg0: memref<2x16x64xf32, #tpu.memory_space<vmem>>, %arg1: memref<48x32xf32, #tpu.memory_space<vmem>>, %arg2: memref<32x10xf32, #tpu.memory_space<vmem>>, %arg3: memref<2xf32, #tpu.memory_space<smem>>, %arg4: memref<2x16x64xf32, #tpu.memory_space<vmem>>) attributes {dimension_semantics = [], scalar_prefetch = 0 : i64, scratch_operands = 0 : i64, tpu.core_type = #tpu.core_type<tc>} {
    %c0 = arith.constant 0 : index
    %c0_0 = arith.constant 0 : index
    %c0_1 = arith.constant 0 : index
    %0 = vector.load %arg0[%c0, %c0_0, %c0_1] : memref<2x16x64xf32, #tpu.memory_space<vmem>>, vector<1x16x64xf32>
    %1 = vector.shape_cast %0 : vector<1x16x64xf32> to vector<16x64xf32>
    %c1 = arith.constant 1 : index
    %c0_2 = arith.constant 0 : index
    %c0_3 = arith.constant 0 : index
    %2 = vector.load %arg0[%c1, %c0_2, %c0_3] : memref<2x16x64xf32, #tpu.memory_space<vmem>>, vector<1x16x64xf32>
    %3 = vector.shape_cast %2 : vector<1x16x64xf32> to vector<16x64xf32>
    %4 = tpu.concatenate %1, %3 in 1 : vector<16x64xf32>, vector<16x64xf32> -> vector<16x128xf32>
    %c0_4 = arith.constant 0 : index
    %c0_5 = arith.constant 0 : index
    %5 = vector.load %arg1[%c0_4, %c0_5] : memref<48x32xf32, #tpu.memory_space<vmem>>, vector<48x32xf32>
    %6 = vector.extract_strided_slice %5 {offsets = [0, 0], sizes = [32, 16], strides = [1, 1]} : vector<48x32xf32> to vector<32x16xf32>
    %7 = vector.extract_strided_slice %5 {offsets = [32, 0], sizes = [16, 32], strides = [1, 1]} : vector<48x32xf32> to vector<16x32xf32>
    %c0_6 = arith.constant 0 : index
    %c0_7 = arith.constant 0 : index
    %8 = vector.load %arg2[%c0_6, %c0_7] : memref<32x10xf32, #tpu.memory_space<vmem>>, vector<32x10xf32>
    %9 = vector.extract_strided_slice %8 {offsets = [0, 0], sizes = [32, 1], strides = [1, 1]} : vector<32x10xf32> to vector<32x1xf32>
    %10 = vector.extract_strided_slice %8 {offsets = [0, 1], sizes = [32, 1], strides = [1, 1]} : vector<32x10xf32> to vector<32x1xf32>
    %11 = vector.extract_strided_slice %8 {offsets = [0, 2], sizes = [32, 1], strides = [1, 1]} : vector<32x10xf32> to vector<32x1xf32>
    %12 = vector.extract_strided_slice %8 {offsets = [0, 3], sizes = [32, 1], strides = [1, 1]} : vector<32x10xf32> to vector<32x1xf32>
    %13 = vector.extract_strided_slice %8 {offsets = [0, 4], sizes = [32, 1], strides = [1, 1]} : vector<32x10xf32> to vector<32x1xf32>
    %14 = vector.extract_strided_slice %8 {offsets = [0, 5], sizes = [32, 1], strides = [1, 1]} : vector<32x10xf32> to vector<32x1xf32>
    %15 = vector.extract_strided_slice %8 {offsets = [0, 6], sizes = [32, 1], strides = [1, 1]} : vector<32x10xf32> to vector<32x1xf32>
    %16 = vector.extract_strided_slice %8 {offsets = [0, 7], sizes = [32, 1], strides = [1, 1]} : vector<32x10xf32> to vector<32x1xf32>
    %17 = vector.extract_strided_slice %8 {offsets = [0, 8], sizes = [32, 1], strides = [1, 1]} : vector<32x10xf32> to vector<32x1xf32>
    %18 = vector.extract_strided_slice %8 {offsets = [0, 9], sizes = [16, 1], strides = [1, 1]} : vector<32x10xf32> to vector<16x1xf32>
    %c0_8 = arith.constant 0 : index
    %19 = memref.load %arg3[%c0_8] : memref<2xf32, #tpu.memory_space<smem>>
    %c1_9 = arith.constant 1 : index
    %20 = memref.load %arg3[%c1_9] : memref<2xf32, #tpu.memory_space<smem>>
    %cst = arith.constant dense<0.000000e+00> : vector<32x128xf32>
    %21 = tpu.matmul %6, %4, %cst {dimension_numbers = #tpu.dot_dimension_numbers<[1], [0], [0], [1], [0, 0, 1, 1], [], []>} : vector<32x16xf32>, vector<16x128xf32>, vector<32x128xf32> -> vector<32x128xf32>
    %22 = vector.broadcast %9 : vector<32x1xf32> to vector<32x128xf32>
    %23 = arith.addf %21, %22 : vector<32x128xf32>
    %cst_10 = arith.constant 0.000000e+00 : f32
    %24 = vector.broadcast %cst_10 : f32 to vector<32x128xf32>
    %25 = arith.cmpf oge, %23, %24 : vector<32x128xf32>
    %26 = vector.broadcast %19 : f32 to vector<32x128xf32>
    %27 = arith.mulf %26, %23 : vector<32x128xf32>
    %28 = arith.select %25, %23, %27 : vector<32x128xi1>, vector<32x128xf32>
    %cst_11 = arith.constant dense<0.000000e+00> : vector<32xf32>
    %29 = vector.multi_reduction <add>, %28, %cst_11 [1] : vector<32x128xf32> to vector<32xf32>
    %30 = vector.shape_cast %29 : vector<32xf32> to vector<32x1xf32>
    %31 = arith.mulf %28, %28 : vector<32x128xf32>
    %cst_12 = arith.constant dense<0.000000e+00> : vector<32xf32>
    %32 = vector.multi_reduction <add>, %31, %cst_12 [1] : vector<32x128xf32> to vector<32xf32>
    %33 = vector.shape_cast %32 : vector<32xf32> to vector<32x1xf32>
    %cst_13 = arith.constant 7.812500e-03 : f32
    %34 = vector.broadcast %cst_13 : f32 to vector<32x1xf32>
    %35 = arith.mulf %30, %34 : vector<32x1xf32>
    %cst_14 = arith.constant 7.812500e-03 : f32
    %36 = vector.broadcast %cst_14 : f32 to vector<32x1xf32>
    %37 = arith.mulf %33, %36 : vector<32x1xf32>
    %38 = arith.mulf %35, %35 : vector<32x1xf32>
    %39 = arith.subf %37, %38 : vector<32x1xf32>
    %cst_15 = arith.constant 9.99999974E-6 : f32
    %40 = vector.broadcast %cst_15 : f32 to vector<32x1xf32>
    %41 = arith.addf %39, %40 : vector<32x1xf32>
    %42 = math.rsqrt %41 : vector<32x1xf32>
    %43 = arith.mulf %10, %42 : vector<32x1xf32>
    %44 = vector.broadcast %43 : vector<32x1xf32> to vector<32x128xf32>
    %45 = arith.mulf %28, %44 : vector<32x128xf32>
    %46 = arith.mulf %35, %43 : vector<32x1xf32>
    %47 = arith.subf %11, %46 : vector<32x1xf32>
    %48 = vector.broadcast %47 : vector<32x1xf32> to vector<32x128xf32>
    %49 = arith.addf %45, %48 : vector<32x128xf32>
    %50 = tpu.iota {dimensions = array<i32: 1>} : vector<32x128xi32>
    %c63_i32 = arith.constant 63 : i32
    %51 = vector.broadcast %c63_i32 : i32 to vector<32x128xi32>
    %52 = arith.andi %50, %51 : vector<32x128xi32>
    %c2_i32 = arith.constant 2 : i32
    %53 = vector.broadcast %c2_i32 : i32 to vector<32x128xi32>
    %54 = arith.cmpi sge, %52, %53 : vector<32x128xi32>
    %55 = vector.extract_strided_slice %49 {offsets = [0, 126], sizes = [32, 2], strides = [1, 1]} : vector<32x128xf32> to vector<32x2xf32>
    %56 = vector.extract_strided_slice %49 {offsets = [0, 0], sizes = [32, 126], strides = [1, 1]} : vector<32x128xf32> to vector<32x126xf32>
    %57 = tpu.concatenate %55, %56 in 1 : vector<32x2xf32>, vector<32x126xf32> -> vector<32x128xf32>
    %cst_16 = arith.constant 0.000000e+00 : f32
    %58 = vector.broadcast %cst_16 : f32 to vector<32x128xf32>
    %59 = arith.select %54, %57, %58 : vector<32x128xi1>, vector<32x128xf32>
    %c62_i32 = arith.constant 62 : i32
    %60 = vector.broadcast %c62_i32 : i32 to vector<32x128xi32>
    %61 = arith.cmpi slt, %52, %60 : vector<32x128xi32>
    %62 = vector.extract_strided_slice %49 {offsets = [0, 2], sizes = [32, 126], strides = [1, 1]} : vector<32x128xf32> to vector<32x126xf32>
    %63 = vector.extract_strided_slice %49 {offsets = [0, 0], sizes = [32, 2], strides = [1, 1]} : vector<32x128xf32> to vector<32x2xf32>
    %64 = tpu.concatenate %62, %63 in 1 : vector<32x126xf32>, vector<32x2xf32> -> vector<32x128xf32>
    %cst_17 = arith.constant 0.000000e+00 : f32
    %65 = vector.broadcast %cst_17 : f32 to vector<32x128xf32>
    %66 = arith.select %61, %64, %65 : vector<32x128xi1>, vector<32x128xf32>
    %67 = vector.broadcast %12 : vector<32x1xf32> to vector<32x128xf32>
    %68 = arith.mulf %67, %59 : vector<32x128xf32>
    %69 = vector.broadcast %13 : vector<32x1xf32> to vector<32x128xf32>
    %70 = arith.mulf %69, %49 : vector<32x128xf32>
    %71 = arith.addf %68, %70 : vector<32x128xf32>
    %72 = vector.broadcast %14 : vector<32x1xf32> to vector<32x128xf32>
    %73 = arith.mulf %72, %66 : vector<32x128xf32>
    %74 = arith.addf %71, %73 : vector<32x128xf32>
    %75 = vector.broadcast %15 : vector<32x1xf32> to vector<32x128xf32>
    %76 = arith.addf %74, %75 : vector<32x128xf32>
    %cst_18 = arith.constant 0.000000e+00 : f32
    %77 = vector.broadcast %cst_18 : f32 to vector<32x128xf32>
    %78 = arith.cmpf oge, %76, %77 : vector<32x128xf32>
    %79 = vector.broadcast %20 : f32 to vector<32x128xf32>
    %80 = arith.mulf %79, %76 : vector<32x128xf32>
    %81 = arith.select %78, %76, %80 : vector<32x128xi1>, vector<32x128xf32>
    %cst_19 = arith.constant dense<0.000000e+00> : vector<32xf32>
    %82 = vector.multi_reduction <add>, %81, %cst_19 [1] : vector<32x128xf32> to vector<32xf32>
    %83 = vector.shape_cast %82 : vector<32xf32> to vector<32x1xf32>
    %84 = arith.mulf %81, %81 : vector<32x128xf32>
    %cst_20 = arith.constant dense<0.000000e+00> : vector<32xf32>
    %85 = vector.multi_reduction <add>, %84, %cst_20 [1] : vector<32x128xf32> to vector<32xf32>
    %86 = vector.shape_cast %85 : vector<32xf32> to vector<32x1xf32>
    %cst_21 = arith.constant 7.812500e-03 : f32
    %87 = vector.broadcast %cst_21 : f32 to vector<32x1xf32>
    %88 = arith.mulf %83, %87 : vector<32x1xf32>
    %cst_22 = arith.constant 7.812500e-03 : f32
    %89 = vector.broadcast %cst_22 : f32 to vector<32x1xf32>
    %90 = arith.mulf %86, %89 : vector<32x1xf32>
    %91 = arith.mulf %88, %88 : vector<32x1xf32>
    %92 = arith.subf %90, %91 : vector<32x1xf32>
    %cst_23 = arith.constant 9.99999974E-6 : f32
    %93 = vector.broadcast %cst_23 : f32 to vector<32x1xf32>
    %94 = arith.addf %92, %93 : vector<32x1xf32>
    %95 = math.rsqrt %94 : vector<32x1xf32>
    %96 = arith.mulf %16, %95 : vector<32x1xf32>
    %97 = vector.broadcast %96 : vector<32x1xf32> to vector<32x128xf32>
    %98 = arith.mulf %81, %97 : vector<32x128xf32>
    %99 = arith.mulf %88, %96 : vector<32x1xf32>
    %100 = arith.subf %17, %99 : vector<32x1xf32>
    %101 = vector.broadcast %100 : vector<32x1xf32> to vector<32x128xf32>
    %102 = arith.addf %98, %101 : vector<32x128xf32>
    %cst_24 = arith.constant dense<0.000000e+00> : vector<16x128xf32>
    %103 = tpu.matmul %7, %102, %cst_24 {dimension_numbers = #tpu.dot_dimension_numbers<[1], [0], [0], [1], [0, 0, 1, 1], [], []>} : vector<16x32xf32>, vector<32x128xf32>, vector<16x128xf32> -> vector<16x128xf32>
    %104 = vector.broadcast %18 : vector<16x1xf32> to vector<16x128xf32>
    %105 = arith.addf %103, %104 : vector<16x128xf32>
    %106 = arith.addf %105, %4 : vector<16x128xf32>
    %107 = vector.extract_strided_slice %106 {offsets = [0, 0], sizes = [16, 64], strides = [1, 1]} : vector<16x128xf32> to vector<16x64xf32>
    %c0_25 = arith.constant 0 : index
    %c0_26 = arith.constant 0 : index
    %c0_27 = arith.constant 0 : index
    %108 = vector.load %arg4[%c0_25, %c0_26, %c0_27] : memref<2x16x64xf32, #tpu.memory_space<vmem>>, vector<1x16x64xf32>
    %109 = vector.shape_cast %108 : vector<1x16x64xf32> to vector<16x64xf32>
    %110 = vector.shape_cast %107 : vector<16x64xf32> to vector<1x16x64xf32>
    tpu.vector_store %arg4[%c0_25, %c0_26, %c0_27], %110 {strides = array<i32>} : memref<2x16x64xf32, #tpu.memory_space<vmem>>, vector<1x16x64xf32>,
    %111 = vector.extract_strided_slice %106 {offsets = [0, 64], sizes = [16, 64], strides = [1, 1]} : vector<16x128xf32> to vector<16x64xf32>
    %c1_28 = arith.constant 1 : index
    %c0_29 = arith.constant 0 : index
    %c0_30 = arith.constant 0 : index
    %112 = vector.load %arg4[%c1_28, %c0_29, %c0_30] : memref<2x16x64xf32, #tpu.memory_space<vmem>>, vector<1x16x64xf32>
    %113 = vector.shape_cast %112 : vector<1x16x64xf32> to vector<16x64xf32>
    %114 = vector.shape_cast %111 : vector<16x64xf32> to vector<1x16x64xf32>
    tpu.vector_store %arg4[%c1_28, %c0_29, %c0_30], %114 {strides = array<i32>} : memref<2x16x64xf32, #tpu.memory_space<vmem>>, vector<1x16x64xf32>,
    return
  }
}

</mosaic_0001>

<llo_original>
// kernel: conv1d_block.1
$region0: #{conv1d_block.1}
  #allocation0 [shape = 'u32[]', space=smem, size = 0x4, offset = 0x4, fixed_abs, tag = 'smem constant byte address 0x4 - core index']
  #allocation1 [shape = 'u32[144,128]{1,0:T(1,128)}', space=vmem, size = 0x12000, scoped, tag = 'internal scratch']
  %s0 = inlined_call_operand.vmem [shape: f32[2,16,64], index: 0, kind: input, shape index: {}]
  %s1 = inlined_call_operand.vmem [shape: f32[48,32], index: 1, kind: input, shape index: {}]
  %s2 = inlined_call_operand.vmem [shape: f32[32,10], index: 2, kind: input, shape index: {}]
  %s3 = inlined_call_operand.vmem [shape: f32[2], index: 3, kind: input, shape index: {}]
  %s4 = inlined_call_operand.hbm [shape: f32[2,16,64], index: 4, kind: output, shape index: {}]
  %s5 = sld [smem:[#allocation0]]
  $region30: #{conv1d_block.1} parent=0
    _
  %s7 = ssub.s32 1, %s5
  %s8 = scalar_select 0, %s7, %s5
  $region1: #{conv1d_block.1} parent=0
    #allocation2 [shape = 'u8[512]{0}', space=smem, size = 0x200, scoped, tag = 'input window, operand 3, single buffered']
    #allocation3 [shape = 's32[1]{0}', space=sflag, size = 0x4, scoped, tag = 'scoped memory for conv1d_block.1']
    #allocation4 [shape = 's32[1]{0}', space=sflag, size = 0x4, scoped, tag = 'scoped memory for conv1d_block.1']
    #allocation5 [shape = 'u8[16384]{0}', space=vmem, size = 0x4000, scoped, tag = 'output window, operand 0, single buffered']
    %9 = vsyncpa [#allocation4], 0
    %10 = vsyncpa [#allocation3], 0
    // Predicated region
    $region2: #{conv1d_block.1} parent=1 // pred_check
      _
    $region3: #{conv1d_block.1} parent=1 // pred_check_branch
      %12 = sbr.rel (0) target = $region5
    $region4: #{conv1d_block.1} parent=1 // pred_region
      _
    $region5: #{conv1d_block.1} parent=1 // pred_fallthru
      _
    // Predicated region
    $region6: #{conv1d_block.1} parent=1 // pred_check
      _
    $region7: #{conv1d_block.1} parent=1 // pred_check_branch
      %14 = sbr.rel (0) target = $region9
    $region8: #{conv1d_block.1} parent=1 // pred_region
      _
    $region9: #{conv1d_block.1} parent=1 // pred_fallthru
      _
    // Predicated region
    $region10: #{conv1d_block.1} parent=1 // pred_check
      _
    $region11: #{conv1d_block.1} parent=1 // pred_check_branch
      %16 = sbr.rel (0) target = $region13
    $region12: #{conv1d_block.1} parent=1 // pred_region
      _
    $region13: #{conv1d_block.1} parent=1 // pred_fallthru
      _
    // Predicated region
    $region14: #{conv1d_block.1} parent=1 // pred_check
      _
    $region15: #{conv1d_block.1} parent=1 // pred_check_branch
      %18 = sbr.rel (0) target = $region17
    $region16: #{conv1d_block.1} parent=1 // pred_region
      %s20 = ssub.s32 16, 16
      %21 = vsyncadd [#allocation4], %s20
      %s23 = sshll.u32 %s3, 4
      %s24 = int_to_ptr.vmem [resolvable:$true] %s23
      %26 = dma.vmem_to_smem %s24, 16, [#allocation2], [#allocation4]
    $region17: #{conv1d_block.1} parent=1 // pred_fallthru
      _
    // Predicated region
    $region18: #{conv1d_block.1} parent=1 // pred_check
      _
    $region19: #{conv1d_block.1} parent=1 // pred_check_branch
      %28 = sbr.rel (0) target = $region21
    $region20: #{conv1d_block.1} parent=1 // pred_region
      %29 = dma.done [#allocation4], 16
    $region21: #{conv1d_block.1} parent=1 // pred_fallthru
      _
    %30 = sfence
    %v31 = vld [vmem:[%s0] sm:$0xff]
    %v32 = vld [vmem:[%s0 + $0x8] sm:$0xff]
    %s33 = scalar_lea.vmem %s0, 16
    %v34 = vld [vmem:[%s33] sm:$0xff]
    %v35 = vld [vmem:[%s33 + $0x8] sm:$0xff]
    %38 = vrot.lane.b32.xlu0 %v34, 64
    %v39 = vpop.permute.xlu0 %38
    %40 = vrot.lane.b32.xlu0 %v35, 64
    %v41 = vpop.permute.xlu0 %40
    %vm44 = vcmask 523264
    %v45 = vsel %vm44, %v31, %v39
    %v46 = vsel %vm44, %v32, %v41
    %v47 = vld [vmem:[%s1] sm:$0xff]
    %v48 = vld [vmem:[%s1 + $0x8] sm:$0xff]
    %v49 = vld [vmem:[%s1 + $0x10] sm:$0xff]
    %v50 = vld [vmem:[%s1 + $0x18] sm:$0xff]
    %v51 = vld [vmem:[%s1 + $0x20] sm:$0xff]
    %v52 = vld [vmem:[%s1 + $0x28] sm:$0xff]
    %v53 = vld [vmem:[%s2] sm:$0xff]
    %v54 = vld [vmem:[%s2 + $0x8] sm:$0xff]
    %v55 = vld [vmem:[%s2 + $0x10] sm:$0xff]
    %v56 = vld [vmem:[%s2 + $0x18] sm:$0xff]
    %s57 = sld [smem:[#allocation2]]
    %s58 = sld [smem:[#allocation2 + $0x1]]
    %60 = vset.pattern.permute.xlu0 0
    %61 = vperm.xlu0 %60, %v53
    %v62 = vpop.permute.xlu0 %61
    %65 = vset.pattern.permute.xlu0 0
    %66 = vperm.xlu0 %65, %v54
    %v67 = vpop.permute.xlu0 %66
    %70 = vset.pattern.permute.xlu0 0
    %71 = vperm.xlu0 %70, %v55
    %v72 = vpop.permute.xlu0 %71
    %75 = vset.pattern.permute.xlu0 0
    %76 = vperm.xlu0 %75, %v56
    %v77 = vpop.permute.xlu0 %76
    %vm79 = vcmask 130048
    %v81 = vsel %vm79, %v47, 0
    %v84 = vsel %vm79, %v48, 0
    %v87 = vsel %vm79, %v49, 0
    %v90 = vsel %vm79, %v50, 0
    %92 = vmatprep.subr.mxu0 0.0
    %93 = vmatpush1.msra.mxu0 0.0
    %94 = vmatprep.subr.mxu0 0.0
    %95 = vmatpush1.msra.mxu0 0.0
    %96 = vmatprep.subr.mxu0 0.0
    %97 = vmatpush1.msra.mxu0 0.0
    %98 = vmatprep.subr.mxu0 0.0
    %99 = vmatpush1.msra.mxu0 0.0
    %100 = vmatprep.subr.mxu0 0.0
    %101 = vmatpush1.msra.mxu0 0.0
    %102 = vmatprep.subr.mxu0 0.0
    %103 = vmatpush1.msra.mxu0 0.0
    %104 = vmatprep.subr.mxu0 0.0
    %105 = vmatpush1.msra.mxu0 0.0
    %106 = vmatprep.subr.mxu0 0.0
    %107 = vmatpush1.msra.mxu0 0.0
    %108 = vmatprep.subr.mxu0 0.0
    %109 = vmatpush1.msra.mxu0 0.0
    %110 = vmatprep.subr.mxu0 0.0
    %111 = vmatpush1.msra.mxu0 0.0
    %112 = vmatprep.subr.mxu0 0.0
    %113 = vmatpush1.msra.mxu0 0.0
    %114 = vmatprep.subr.mxu0 0.0
    %115 = vmatpush1.msra.mxu0 0.0
    %116 = vmatprep.subr.mxu0 0.0
    %117 = vmatpush1.msra.mxu0 0.0
    %118 = vmatprep.subr.mxu0 0.0
    %119 = vmatpush1.msra.mxu0 0.0
    %120 = vmatprep.subr.mxu0 0.0
    %121 = vmatpush1.msra.mxu0 %v46
    %122 = vmatprep.subr.mxu0 0.0
    %123 = vmatpush1.msra.mxu0 %v45
    %124 = vmatprep.subr.mxu0 0.0
    %125 = vmatpush2.msra.mxu0 0.0
    %126 = vmatprep.subr.mxu0 0.0
    %127 = vmatpush2.msra.mxu0 0.0
    %128 = vmatprep.subr.mxu0 0.0
    %129 = vmatpush2.msra.mxu0 0.0
    %130 = vmatprep.subr.mxu0 0.0
    %131 = vmatpush2.msra.mxu0 0.0
    %132 = vmatprep.subr.mxu0 0.0
    %133 = vmatpush2.msra.mxu0 0.0
    %134 = vmatprep.subr.mxu0 0.0
    %135 = vmatpush2.msra.mxu0 0.0
    %136 = vmatprep.subr.mxu0 0.0
    %137 = vmatpush2.msra.mxu0 0.0
    %138 = vmatprep.subr.mxu0 0.0
    %139 = vmatpush2.msra.mxu0 0.0
    %140 = vmatprep.subr.mxu0 0.0
    %141 = vmatpush2.msra.mxu0 0.0
    %142 = vmatprep.subr.mxu0 0.0
    %143 = vmatpush2.msra.mxu0 0.0
    %144 = vmatprep.subr.mxu0 0.0
    %145 = vmatpush2.msra.mxu0 0.0
    %146 = vmatprep.subr.mxu0 0.0
    %147 = vmatpush2.msra.mxu0 0.0
    %148 = vmatprep.subr.mxu0 0.0
    %149 = vmatpush2.msra.mxu0 0.0
    %150 = vmatprep.subr.mxu0 0.0
    %151 = vmatpush2.msra.mxu0 0.0
    %152 = vmatprep.subr.mxu0 0.0
    %153 = vmatpush2.msra.mxu0 0.0
    %154 = vmatprep.subr.mxu0 0.0
    %155 = vmatpush2.msra.mxu0 0.0
    %156 = vmatprep.mubr.f32.mxu0 0.0
    %157 = vmatmul.mubr.f32.gmra.mxu0 %v81
    %v158 = vpop.f32.mrf.mxu0
    %v159 = vadd.f32 %v62, %v158
    %v160 = vpop.f32.mrf.mxu0
    %161 = vmatprep.mubr.f32.mxu0 0.0
    %162 = vmatmul.mubr.f32.gmra.mxu0 %v84
    %v163 = vpop.f32.mrf.mxu0
    %v164 = vadd.f32 %v67, %v163
    %v165 = vpop.f32.mrf.mxu0
    %166 = vmatprep.mubr.f32.mxu0 0.0
    %167 = vmatmul.mubr.f32.gmra.mxu0 %v87
    %v168 = vpop.f32.mrf.mxu0
    %v169 = vadd.f32 %v72, %v168
    %v170 = vpop.f32.mrf.mxu0
    %171 = vmatprep.mubr.f32.mxu0 0.0
    %172 = vmatmul.mubr.f32.gmra.mxu0 %v90
    %v173 = vpop.f32.mrf.mxu0
    %v174 = vadd.f32 %v77, %v173
    %v175 = vpop.f32.mrf.mxu0
    %176 = vdwg.mxu0
    %vm177 = vcmp.ge.f32.partialorder %v159, 0.0
    %vm178 = vcmp.ge.f32.partialorder %v164, 0.0
    %vm179 = vcmp.ge.f32.partialorder %v169, 0.0
    %vm180 = vcmp.ge.f32.partialorder %v174, 0.0
    %v181 = vstv %s57
    %v182 = vmul.f32 %v181, %v159
    %v183 = vmul.f32 %v181, %v164
    %v184 = vmul.f32 %v181, %v169
    %v185 = vmul.f32 %v181, %v174
    %v186 = vsel %vm177, %v159, %v182
    %v187 = vsel %vm178, %v164, %v183
    %v188 = vsel %vm179, %v169, %v184
    %v189 = vsel %vm180, %v174, %v185
    %190 = vadd.xlane.f32.xlu0 %v186
    %v191 = vpop.xlane.xlu0 %190
    %192 = vadd.xlane.f32.xlu0 %v187
    %v193 = vpop.xlane.xlu0 %192
    %194 = vadd.xlane.f32.xlu0 %v188
    %v195 = vpop.xlane.xlu0 %194
    %196 = vadd.xlane.f32.xlu0 %v189
    %v197 = vpop.xlane.xlu0 %196
    %v198 = vmul.f32 %v186, %v186
    %v199 = vmul.f32 %v187, %v187
    %v200 = vmul.f32 %v188, %v188
    %v201 = vmul.f32 %v189, %v189
    %202 = vadd.xlane.f32.xlu0 %v198
    %v203 = vpop.xlane.xlu0 %202
    %204 = vadd.xlane.f32.xlu0 %v199
    %v205 = vpop.xlane.xlu0 %204
    %206 = vadd.xlane.f32.xlu0 %v200
    %v207 = vpop.xlane.xlu0 %206
    %208 = vadd.xlane.f32.xlu0 %v201
    %v209 = vpop.xlane.xlu0 %208
    %v210 = vmul.f32 %v191, 0.0078125
    %v211 = vmul.f32 %v193, 0.0078125
    %v212 = vmul.f32 %v195, 0.0078125
    %v213 = vmul.f32 %v197, 0.0078125
    %v214 = vmul.f32 %v203, 0.0078125
    %v215 = vmul.f32 %v205, 0.0078125
    %v216 = vmul.f32 %v207, 0.0078125
    %v217 = vmul.f32 %v209, 0.0078125
    %v218 = vmul.f32 %v210, %v210
    %v219 = vmul.f32 %v211, %v211
    %v220 = vmul.f32 %v212, %v212
    %v221 = vmul.f32 %v213, %v213
    %v222 = vsub.f32 %v214, %v218
    %v223 = vsub.f32 %v215, %v219
    %v224 = vsub.f32 %v216, %v220
    %v225 = vsub.f32 %v217, %v221
    %v226 = vadd.f32 %v222, 1e-05
    %v227 = vadd.f32 %v223, 1e-05
    %v228 = vadd.f32 %v224, 1e-05
    %v229 = vadd.f32 %v225, 1e-05
    %v230 = vrsqrt.pop %v226
    %v231 = vrsqrt.pop %v227
    %v232 = vrsqrt.pop %v228
    %v233 = vrsqrt.pop %v229
    %v234 = vmul.f32 %v53, %v230
    %v235 = vmul.f32 %v54, %v231
    %v236 = vmul.f32 %v55, %v232
    %v237 = vmul.f32 %v56, %v233
    %239 = vset.pattern.permute.xlu0 1
    %240 = vperm.xlu0 %239, %v234
    %v241 = vpop.permute.xlu0 %240
    %244 = vset.pattern.permute.xlu0 1
    %245 = vperm.xlu0 %244, %v235
    %v246 = vpop.permute.xlu0 %245
    %249 = vset.pattern.permute.xlu0 1
    %250 = vperm.xlu0 %249, %v236
    %v251 = vpop.permute.xlu0 %250
    %254 = vset.pattern.permute.xlu0 1
    %255 = vperm.xlu0 %254, %v237
    %v256 = vpop.permute.xlu0 %255
    %v258 = vmul.f32 %v186, %v241
    %v259 = vmul.f32 %v187, %v246
    %v260 = vmul.f32 %v188, %v251
    %v261 = vmul.f32 %v189, %v256
    %v262 = vmul.f32 %v210, %v234
    %v263 = vmul.f32 %v211, %v235
    %v264 = vmul.f32 %v212, %v236
    %v265 = vmul.f32 %v213, %v237
    %270 = vrot.lane.b32.xlu0 %v262, 1
    %v271 = vpop.permute.xlu0 %270
    %272 = vrot.lane.b32.xlu0 %v263, 1
    %v273 = vpop.permute.xlu0 %272
    %274 = vrot.lane.b32.xlu0 %v264, 1
    %v275 = vpop.permute.xlu0 %274
    %276 = vrot.lane.b32.xlu0 %v265, 1
    %v277 = vpop.permute.xlu0 %276
    %v282 = vsub.f32 %v53, %v271
    %v283 = vsub.f32 %v54, %v273
    %v284 = vsub.f32 %v55, %v275
    %v285 = vsub.f32 %v56, %v277
    %287 = vset.pattern.permute.xlu0 2
    %288 = vperm.xlu0 %287, %v282
    %v289 = vpop.permute.xlu0 %288
    %292 = vset.pattern.permute.xlu0 2
    %293 = vperm.xlu0 %292, %v283
    %v294 = vpop.permute.xlu0 %293
    %297 = vset.pattern.permute.xlu0 2
    %298 = vperm.xlu0 %297, %v284
    %v299 = vpop.permute.xlu0 %298
    %302 = vset.pattern.permute.xlu0 2
    %303 = vperm.xlu0 %302, %v285
    %v304 = vpop.permute.xlu0 %303
    %v306 = vadd.f32 %v258, %v289
    %v307 = vadd.f32 %v259, %v294
    %v308 = vadd.f32 %v260, %v299
    %v309 = vadd.f32 %v261, %v304
    %v310 = vlaneseq
    %v311 = vand.u32 %v310, 127
    %v312 = vand.u32 %v311, 63
    %vm313 = vcmp.ge.s32.totalorder %v312, 2
    %318 = vrot.lane.b32.xlu0 %v306, 2
    %v319 = vpop.permute.xlu0 %318
    %320 = vrot.lane.b32.xlu0 %v307, 2
    %v321 = vpop.permute.xlu0 %320
    %322 = vrot.lane.b32.xlu0 %v308, 2
    %v323 = vpop.permute.xlu0 %322
    %324 = vrot.lane.b32.xlu0 %v309, 2
    %v325 = vpop.permute.xlu0 %324
    %v330 = vsel %vm313, %v319, 0.0
    %v331 = vsel %vm313, %v321, 0.0
    %v332 = vsel %vm313, %v323, 0.0
    %v333 = vsel %vm313, %v325, 0.0
    %vm334 = vcmp.lt.s32.totalorder %v312, 62
    %335 = vrot.lane.b32.xlu0 %v306, 126
    %v336 = vpop.permute.xlu0 %335
    %337 = vrot.lane.b32.xlu0 %v307, 126
    %v338 = vpop.permute.xlu0 %337
    %339 = vrot.lane.b32.xlu0 %v308, 126
    %v340 = vpop.permute.xlu0 %339
    %341 = vrot.lane.b32.xlu0 %v309, 126
    %v342 = vpop.permute.xlu0 %341
    %v347 = vsel %vm334, %v336, 0.0
    %v348 = vsel %vm334, %v338, 0.0
    %v349 = vsel %vm334, %v340, 0.0
    %v350 = vsel %vm334, %v342, 0.0
    %351 = vset.pattern.permute.xlu0 3
    %352 = vperm.xlu0 %351, %v53
    %v353 = vpop.permute.xlu0 %352
    %355 = vset.pattern.permute.xlu0 3
    %356 = vperm.xlu0 %355, %v54
    %v357 = vpop.permute.xlu0 %356
    %359 = vset.pattern.permute.xlu0 3
    %360 = vperm.xlu0 %359, %v55
    %v361 = vpop.permute.xlu0 %360
    %363 = vset.pattern.permute.xlu0 3
    %364 = vperm.xlu0 %363, %v56
    %v365 = vpop.permute.xlu0 %364
    %v367 = vmul.f32 %v353, %v330
    %v368 = vmul.f32 %v357, %v331
    %v369 = vmul.f32 %v361, %v332
    %v370 = vmul.f32 %v365, %v333
    %371 = vset.pattern.permute.xlu0 4
    %372 = vperm.xlu0 %371, %v53
    %v373 = vpop.permute.xlu0 %372
    %375 = vset.pattern.permute.xlu0 4
    %376 = vperm.xlu0 %375, %v54
    %v377 = vpop.permute.xlu0 %376
    %379 = vset.pattern.permute.xlu0 4
    %380 = vperm.xlu0 %379, %v55
    %v381 = vpop.permute.xlu0 %380
    %383 = vset.pattern.permute.xlu0 4
    %384 = vperm.xlu0 %383, %v56
    %v385 = vpop.permute.xlu0 %384
    %v387 = vmul.f32 %v373, %v306
    %v388 = vmul.f32 %v377, %v307
    %v389 = vmul.f32 %v381, %v308
    %v390 = vmul.f32 %v385, %v309
    %v391 = vadd.f32 %v367, %v387
    %v392 = vadd.f32 %v368, %v388
    %v393 = vadd.f32 %v369, %v389
    %v394 = vadd.f32 %v370, %v390
    %395 = vset.pattern.permute.xlu0 5
    %396 = vperm.xlu0 %395, %v53
    %v397 = vpop.permute.xlu0 %396
    %399 = vset.pattern.permute.xlu0 5
    %400 = vperm.xlu0 %399, %v54
    %v401 = vpop.permute.xlu0 %400
    %403 = vset.pattern.permute.xlu0 5
    %404 = vperm.xlu0 %403, %v55
    %v405 = vpop.permute.xlu0 %404
    %407 = vset.pattern.permute.xlu0 5
    %408 = vperm.xlu0 %407, %v56
    %v409 = vpop.permute.xlu0 %408
    %v411 = vmul.f32 %v397, %v347
    %v412 = vmul.f32 %v401, %v348
    %v413 = vmul.f32 %v405, %v349
    %v414 = vmul.f32 %v409, %v350
    %v415 = vadd.f32 %v391, %v411
    %v416 = vadd.f32 %v392, %v412
    %v417 = vadd.f32 %v393, %v413
    %v418 = vadd.f32 %v394, %v414
    %419 = vset.pattern.permute.xlu0 6
    %420 = vperm.xlu0 %419, %v53
    %v421 = vpop.permute.xlu0 %420
    %423 = vset.pattern.permute.xlu0 6
    %424 = vperm.xlu0 %423, %v54
    %v425 = vpop.permute.xlu0 %424
    %427 = vset.pattern.permute.xlu0 6
    %428 = vperm.xlu0 %427, %v55
    %v429 = vpop.permute.xlu0 %428
    %431 = vset.pattern.permute.xlu0 6
    %432 = vperm.xlu0 %431, %v56
    %v433 = vpop.permute.xlu0 %432
    %v435 = vadd.f32 %v415, %v421
    %v436 = vadd.f32 %v416, %v425
    %v437 = vadd.f32 %v417, %v429
    %v438 = vadd.f32 %v418, %v433
    %vm439 = vcmp.ge.f32.partialorder %v435, 0.0
    %vm440 = vcmp.ge.f32.partialorder %v436, 0.0
    %vm441 = vcmp.ge.f32.partialorder %v437, 0.0
    %vm442 = vcmp.ge.f32.partialorder %v438, 0.0
    %v443 = vstv %s58
    %v444 = vmul.f32 %v443, %v435
    %v445 = vmul.f32 %v443, %v436
    %v446 = vmul.f32 %v443, %v437
    %v447 = vmul.f32 %v443, %v438
    %v448 = vsel %vm439, %v435, %v444
    %v449 = vsel %vm440, %v436, %v445
    %v450 = vsel %vm441, %v437, %v446
    %v451 = vsel %vm442, %v438, %v447
    %452 = vadd.xlane.f32.xlu0 %v448
    %v453 = vpop.xlane.xlu0 %452
    %454 = vadd.xlane.f32.xlu0 %v449
    %v455 = vpop.xlane.xlu0 %454
    %456 = vadd.xlane.f32.xlu0 %v450
    %v457 = vpop.xlane.xlu0 %456
    %458 = vadd.xlane.f32.xlu0 %v451
    %v459 = vpop.xlane.xlu0 %458
    %v460 = vmul.f32 %v448, %v448
    %v461 = vmul.f32 %v449, %v449
    %v462 = vmul.f32 %v450, %v450
    %v463 = vmul.f32 %v451, %v451
    %464 = vadd.xlane.f32.xlu0 %v460
    %v465 = vpop.xlane.xlu0 %464
    %466 = vadd.xlane.f32.xlu0 %v461
    %v467 = vpop.xlane.xlu0 %466
    %468 = vadd.xlane.f32.xlu0 %v462
    %v469 = vpop.xlane.xlu0 %468
    %470 = vadd.xlane.f32.xlu0 %v463
    %v471 = vpop.xlane.xlu0 %470
    %v472 = vmul.f32 %v453, 0.0078125
    %v473 = vmul.f32 %v455, 0.0078125
    %v474 = vmul.f32 %v457, 0.0078125
    %v475 = vmul.f32 %v459, 0.0078125
    %v476 = vmul.f32 %v465, 0.0078125
    %v477 = vmul.f32 %v467, 0.0078125
    %v478 = vmul.f32 %v469, 0.0078125
    %v479 = vmul.f32 %v471, 0.0078125
    %v480 = vmul.f32 %v472, %v472
    %v481 = vmul.f32 %v473, %v473
    %v482 = vmul.f32 %v474, %v474
    %v483 = vmul.f32 %v475, %v475
    %v484 = vsub.f32 %v476, %v480
    %v485 = vsub.f32 %v477, %v481
    %v486 = vsub.f32 %v478, %v482
    %v487 = vsub.f32 %v479, %v483
    %v488 = vadd.f32 %v484, 1e-05
    %v489 = vadd.f32 %v485, 1e-05
    %v490 = vadd.f32 %v486, 1e-05
    %v491 = vadd.f32 %v487, 1e-05
    %v492 = vrsqrt.pop %v488
    %v493 = vrsqrt.pop %v489
    %v494 = vrsqrt.pop %v490
    %v495 = vrsqrt.pop %v491
    %v496 = vmul.f32 %v53, %v492
    %v497 = vmul.f32 %v54, %v493
    %v498 = vmul.f32 %v55, %v494
    %v499 = vmul.f32 %v56, %v495
    %501 = vset.pattern.permute.xlu0 7
    %502 = vperm.xlu0 %501, %v496
    %v503 = vpop.permute.xlu0 %502
    %506 = vset.pattern.permute.xlu0 7
    %507 = vperm.xlu0 %506, %v497
    %v508 = vpop.permute.xlu0 %507
    %511 = vset.pattern.permute.xlu0 7
    %512 = vperm.xlu0 %511, %v498
    %v513 = vpop.permute.xlu0 %512
    %516 = vset.pattern.permute.xlu0 7
    %517 = vperm.xlu0 %516, %v499
    %v518 = vpop.permute.xlu0 %517
    %v520 = vmul.f32 %v448, %v503
    %v521 = vmul.f32 %v449, %v508
    %v522 = vmul.f32 %v450, %v513
    %v523 = vmul.f32 %v451, %v518
    %v524 = vmul.f32 %v472, %v496
    %v525 = vmul.f32 %v473, %v497
    %v526 = vmul.f32 %v474, %v498
    %v527 = vmul.f32 %v475, %v499
    %532 = vrot.lane.b32.xlu0 %v524, 1
    %v533 = vpop.permute.xlu0 %532
    %534 = vrot.lane.b32.xlu0 %v525, 1
    %v535 = vpop.permute.xlu0 %534
    %536 = vrot.lane.b32.xlu0 %v526, 1
    %v537 = vpop.permute.xlu0 %536
    %538 = vrot.lane.b32.xlu0 %v527, 1
    %v539 = vpop.permute.xlu0 %538
    %v544 = vsub.f32 %v53, %v533
    %v545 = vsub.f32 %v54, %v535
    %v546 = vsub.f32 %v55, %v537
    %v547 = vsub.f32 %v56, %v539
    %549 = vset.pattern.permute.xlu0 8
    %550 = vperm.xlu0 %549, %v544
    %v551 = vpop.permute.xlu0 %550
    %554 = vset.pattern.permute.xlu0 8
    %555 = vperm.xlu0 %554, %v545
    %v556 = vpop.permute.xlu0 %555
    %559 = vset.pattern.permute.xlu0 8
    %560 = vperm.xlu0 %559, %v546
    %v561 = vpop.permute.xlu0 %560
    %564 = vset.pattern.permute.xlu0 8
    %565 = vperm.xlu0 %564, %v547
    %v566 = vpop.permute.xlu0 %565
    %v568 = vadd.f32 %v520, %v551
    %v569 = vadd.f32 %v521, %v556
    %v570 = vadd.f32 %v522, %v561
    %v571 = vadd.f32 %v523, %v566
    %572 = vset.pattern.permute.xlu0 9
    %573 = vperm.xlu0 %572, %v53
    %v574 = vpop.permute.xlu0 %573
    %576 = vset.pattern.permute.xlu0 9
    %577 = vperm.xlu0 %576, %v54
    %v578 = vpop.permute.xlu0 %577
    %vm580 = vcmask 261120
    %v582 = vsel %vm580, %v51, 0
    %v585 = vsel %vm580, %v52, 0
    %587 = vmatprep.subr.mxu0 0.0
    %588 = vmatpush1.msra.mxu0 0.0
    %589 = vmatprep.subr.mxu0 0.0
    %590 = vmatpush1.msra.mxu0 0.0
    %591 = vmatprep.subr.mxu0 0.0
    %592 = vmatpush1.msra.mxu0 0.0
    %593 = vmatprep.subr.mxu0 0.0
    %594 = vmatpush1.msra.mxu0 0.0
    %595 = vmatprep.subr.mxu0 0.0
    %596 = vmatpush1.msra.mxu0 0.0
    %597 = vmatprep.subr.mxu0 0.0
    %598 = vmatpush1.msra.mxu0 0.0
    %599 = vmatprep.subr.mxu0 0.0
    %600 = vmatpush1.msra.mxu0 0.0
    %601 = vmatprep.subr.mxu0 0.0
    %602 = vmatpush1.msra.mxu0 0.0
    %603 = vmatprep.subr.mxu0 0.0
    %604 = vmatpush1.msra.mxu0 0.0
    %605 = vmatprep.subr.mxu0 0.0
    %606 = vmatpush1.msra.mxu0 0.0
    %607 = vmatprep.subr.mxu0 0.0
    %608 = vmatpush1.msra.mxu0 0.0
    %609 = vmatprep.subr.mxu0 0.0
    %610 = vmatpush1.msra.mxu0 0.0
    %611 = vmatprep.subr.mxu0 0.0
    %612 = vmatpush1.msra.mxu0 %v571
    %613 = vmatprep.subr.mxu0 0.0
    %614 = vmatpush1.msra.mxu0 %v570
    %615 = vmatprep.subr.mxu0 0.0
    %616 = vmatpush1.msra.mxu0 %v569
    %617 = vmatprep.subr.mxu0 0.0
    %618 = vmatpush1.msra.mxu0 %v568
    %619 = vmatprep.subr.mxu0 0.0
    %620 = vmatpush2.msra.mxu0 0.0
    %621 = vmatprep.subr.mxu0 0.0
    %622 = vmatpush2.msra.mxu0 0.0
    %623 = vmatprep.subr.mxu0 0.0
    %624 = vmatpush2.msra.mxu0 0.0
    %625 = vmatprep.subr.mxu0 0.0
    %626 = vmatpush2.msra.mxu0 0.0
    %627 = vmatprep.subr.mxu0 0.0
    %628 = vmatpush2.msra.mxu0 0.0
    %629 = vmatprep.subr.mxu0 0.0
    %630 = vmatpush2.msra.mxu0 0.0
    %631 = vmatprep.subr.mxu0 0.0
    %632 = vmatpush2.msra.mxu0 0.0
    %633 = vmatprep.subr.mxu0 0.0
    %634 = vmatpush2.msra.mxu0 0.0
    %635 = vmatprep.subr.mxu0 0.0
    %636 = vmatpush2.msra.mxu0 0.0
    %637 = vmatprep.subr.mxu0 0.0
    %638 = vmatpush2.msra.mxu0 0.0
    %639 = vmatprep.subr.mxu0 0.0
    %640 = vmatpush2.msra.mxu0 0.0
    %641 = vmatprep.subr.mxu0 0.0
    %642 = vmatpush2.msra.mxu0 0.0
    %643 = vmatprep.subr.mxu0 0.0
    %644 = vmatpush2.msra.mxu0 0.0
    %645 = vmatprep.subr.mxu0 0.0
    %646 = vmatpush2.msra.mxu0 0.0
    %647 = vmatprep.subr.mxu0 0.0
    %648 = vmatpush2.msra.mxu0 0.0
    %649 = vmatprep.subr.mxu0 0.0
    %650 = vmatpush2.msra.mxu0 0.0
    %651 = vmatprep.mubr.f32.mxu0 0.0
    %652 = vmatmul.mubr.f32.gmra.mxu0 %v582
    %v653 = vpop.f32.mrf.mxu0
    %v654 = vadd.f32 %v574, %v653
    %v655 = vpop.f32.mrf.mxu0
    %656 = vmatprep.mubr.f32.mxu0 0.0
    %657 = vmatmul.mubr.f32.gmra.mxu0 %v585
    %v658 = vpop.f32.mrf.mxu0
    %v659 = vadd.f32 %v578, %v658
    %v660 = vpop.f32.mrf.mxu0
    %661 = vdwg.mxu0
    %v662 = vadd.f32 %v654, %v45
    %v663 = vadd.f32 %v659, %v46
    %664 = vst.msk [vmem:[#allocation5] sm:$0xff] %vm44, %v662
    %665 = vst.msk [vmem:[#allocation5 + $0x8] sm:$0xff] %vm44, %v663
    %668 = vrot.lane.b32.xlu0 %v662, 64
    %v669 = vpop.permute.xlu0 %668
    %670 = vrot.lane.b32.xlu0 %v663, 64
    %v671 = vpop.permute.xlu0 %670
    %s674 = scalar_lea.vmem [#allocation5], 16
    %675 = vst.msk [vmem:[%s674] sm:$0xff] %vm44, %v669
    %676 = vst.msk [vmem:[%s674 + $0x8] sm:$0xff] %vm44, %v671
    // Predicated region
    $region22: #{conv1d_block.1} parent=1 // pred_check
      _
    $region23: #{conv1d_block.1} parent=1 // pred_check_branch
      %678 = sbr.rel (0) target = $region25
    $region24: #{conv1d_block.1} parent=1 // pred_region
      %s680 = ssub.s32 512, 512
      %681 = vsyncadd [#allocation3], %s680
      %s682 = sshll.u32 [#allocation5], 4
      %s683 = int_to_ptr.vmem [resolvable:$true] %s682
      %688 = dma.vmem_to_hbm [thread:$0]  %s683, 512, %s4, [#allocation3], 128, 128, 8
    $region25: #{conv1d_block.1} parent=1 // pred_fallthru
      _
    // Predicated region
    $region26: #{conv1d_block.1} parent=1 // pred_check
      _
    $region27: #{conv1d_block.1} parent=1 // pred_check_branch
      %690 = sbr.rel (0) target = $region29
    $region28: #{conv1d_block.1} parent=1 // pred_region
      %691 = dma.done [#allocation3], 512
    $region29: #{conv1d_block.1} parent=1 // pred_fallthru
      _
    %692 = vsyncpa [#allocation3], 1
    %693 = vsyncpa [#allocation4], 1

</llo_original>
